<compile_context>
chip_gen: v7x
topology: tpu7x:2x2x1
jax: 0.10.0
libtpu: 0.0.40
codegen_flags: <defaults>
</compile_context>

<pallas_src>
import jax
import jax.numpy as jnp
from jax import lax
from jax.experimental import pallas as pl
from jax.experimental.pallas import tpu as pltpu

# ---- Module hyper-parameters (tsteps == 10 branch of StateHistoryEncoder) ----
CH = 10                  # channel_size
C3 = 3 * CH              # encoder output / conv1 in_channels = 30
C2 = 2 * CH              # conv1 out_channels = 20
TSTEPS = 10
INPUT_SIZE = 32
OUTPUT_SIZE = 20
K1, S1 = 4, 2            # conv1 kernel / stride
K2, S2 = 2, 1            # conv2 kernel / stride
L1 = (TSTEPS - K1) // S1 + 1   # = 4
L2 = (L1 - K2) // S2 + 1       # = 3

DEFAULT_BLOCK_ROWS = 512       # batch rows per grid step (sweepable 256..1024)


def _round_up(x, m):
    return ((x + m - 1) // m) * m


def _elu(x):
    # ELU(alpha=1): x if x > 0 else exp(x) - 1 (overflow-safe).
    return jnp.where(x > 0, x, jnp.exp(jnp.minimum(x, 0.0)) - 1.0)


def she_kernel(obs_ref, we_ref, be_ref, w1_ref, b1_ref, w2_ref, b2_ref,
               w3_ref, b3_ref, out_ref):
    # Encoder (per-timestep Linear) as one block-diagonal matmul: [B,320]@[320,300].
    proj = _elu(jnp.dot(obs_ref[...], we_ref[...],
                        preferred_element_type=jnp.float32) + be_ref[...])
    # Conv1 (30->20, k=4, s=2) as one banded matmul over all 4 output positions.
    c1 = _elu(jnp.dot(proj, w1_ref[...],
                      preferred_element_type=jnp.float32) + b1_ref[...])
    # Conv2 (20->10, k=2, s=1) as one banded matmul over all 3 output positions.
    c2 = _elu(jnp.dot(c1, w2_ref[...],
                      preferred_element_type=jnp.float32) + b2_ref[...])
    # Output Linear (columns pre-permuted for PyTorch's (channel,length) flatten).
    out_ref[...] = _elu(jnp.dot(c2, w3_ref[...],
                                preferred_element_type=jnp.float32) + b3_ref[...])


def state_history_encoder(obs, kernel_params, block_rows=DEFAULT_BLOCK_ROWS):
    nd = obs.shape[0]
    bt = min(block_rows, _round_up(nd, 8))       # tile rows (multiple of 8)
    nd_pad = _round_up(nd, bt)
    obs_p = obs if nd_pad == nd else jnp.pad(obs, ((0, nd_pad - nd), (0, 0)))

    # Weights/biases are grid-invariant (block index always (0,0)) -> DMA'd once.
    # (pl.Buffered(1) single-buffering considered; skipped since footprint <1 MiB.)
    const2d = lambda a: pl.BlockSpec(a.shape, lambda i: (0, 0))

    out = pl.pallas_call(
        she_kernel,
        out_shape=jax.ShapeDtypeStruct((nd_pad, OUTPUT_SIZE), jnp.float32),
        grid_spec=pltpu.PrefetchScalarGridSpec(
            num_scalar_prefetch=0,
            grid=(nd_pad // bt,),
            in_specs=[pl.BlockSpec((bt, TSTEPS * INPUT_SIZE), lambda i: (i, 0))]
                     + [const2d(p) for p in kernel_params],
            out_specs=pl.BlockSpec((bt, OUTPUT_SIZE), lambda i: (i, 0)),
        ),
        compiler_params=pltpu.CompilerParams(
            dimension_semantics=("parallel",)),
    )(obs_p, *kernel_params)
    return out if nd_pad == nd else out[:nd]


def make_torch_params(key):
    """Deterministic parameters in PyTorch layout."""
    ks = jax.random.split(key, 8)

    def u(k, shape, fan_in):
        bound = 1.0 / jnp.sqrt(float(fan_in))
        return jax.random.uniform(k, shape, jnp.float32, -bound, bound)

    W_enc = u(ks[0], (C3, INPUT_SIZE), INPUT_SIZE)     # [30, 32]
    b_enc = u(ks[1], (C3,), INPUT_SIZE)
    W1 = u(ks[2], (C2, C3, K1), C3 * K1)               # [20, 30, 4]
    b1 = u(ks[3], (C2,), C3 * K1)
    W2 = u(ks[4], (CH, C2, K2), C2 * K2)               # [10, 20, 2]
    b2 = u(ks[5], (CH,), C2 * K2)
    W3 = u(ks[6], (OUTPUT_SIZE, C3), C3)               # [20, 30]
    b3 = u(ks[7], (OUTPUT_SIZE,), C3)
    return (W_enc, b_enc, W1, b1, W2, b2, W3, b3)


def build_kernel_params(torch_params):
    """Bake the Linear+Conv1d stack into fused block-diagonal/banded matmul weights."""
    W_enc, b_enc, W1, b1, W2, b2, W3, b3 = torch_params

    # Encoder: block-diagonal [T*IN, T*C3]; row t*IN+k, col t*C3+c = W_enc[c, k].
    we_t = W_enc.T                                              # [IN, C3]
    Wbd_e = jnp.zeros((TSTEPS * INPUT_SIZE, TSTEPS * C3), jnp.float32)
    for t in range(TSTEPS):
        Wbd_e = Wbd_e.at[t * INPUT_SIZE:(t + 1) * INPUT_SIZE,
                         t * C3:(t + 1) * C3].set(we_t)
    be_t = jnp.tile(b_enc, TSTEPS).reshape(1, TSTEPS * C3)

    # Conv1 (k=4, s=2): banded [T*C3, L1*C2], band rows in (tap j, in-chan) order.
    w1m = jnp.transpose(W1, (2, 1, 0)).reshape(K1 * C3, C2)
    Wb1 = jnp.zeros((TSTEPS * C3, L1 * C2), jnp.float32)
    for l in range(L1):
        r0 = S1 * l * C3
        Wb1 = Wb1.at[r0:r0 + K1 * C3, l * C2:(l + 1) * C2].set(w1m)
    b1_t = jnp.tile(b1, L1).reshape(1, L1 * C2)

    # Conv2 (k=2, s=1): banded [L1*C2, L2*CH].
    w2m = jnp.transpose(W2, (2, 1, 0)).reshape(K2 * C2, CH)
    Wb2 = jnp.zeros((L1 * C2, L2 * CH), jnp.float32)
    for l in range(L2):
        r0 = S2 * l * C2
        Wb2 = Wb2.at[r0:r0 + K2 * C2, l * CH:(l + 1) * CH].set(w2m)
    b2_t = jnp.tile(b2, L2).reshape(1, L2 * CH)

    # Output Linear: permute W3 columns from PyTorch flatten order (channel, length)
    # to the kernel's (length, channel) column order.
    w3p = jnp.transpose(W3.T.reshape(CH, L2, OUTPUT_SIZE),
                        (1, 0, 2)).reshape(L2 * CH, OUTPUT_SIZE)
    b3_r = b3.reshape(1, OUTPUT_SIZE)

    return (Wbd_e, be_t, Wb1, b1_t, Wb2, b2_t, w3p, b3_r)


def reference_forward(obs, torch_params):
    """Plain-JAX re-implementation of the PyTorch forward (NCL convs)."""
    W_enc, b_enc, W1, b1, W2, b2, W3, b3 = torch_params
    hp = lax.Precision.HIGHEST
    nd = obs.shape[0]
    x = obs.reshape(nd * TSTEPS, INPUT_SIZE)
    proj = _elu(jnp.dot(x, W_enc.T, precision=hp) + b_enc)
    proj = jnp.transpose(proj.reshape(nd, TSTEPS, C3), (0, 2, 1))   # [nd, 30, T]
    c1 = lax.conv_general_dilated(proj, W1, (S1,), 'VALID',
                                  dimension_numbers=('NCH', 'OIH', 'NCH'),
                                  precision=hp)
    c1 = _elu(c1 + b1[None, :, None])
    c2 = lax.conv_general_dilated(c1, W2, (S2,), 'VALID',
                                  dimension_numbers=('NCH', 'OIH', 'NCH'),
                                  precision=hp)
    c2 = _elu(c2 + b2[None, :, None])
    flat = c2.reshape(nd, CH * L2)       # PyTorch Flatten: (channel, length)
    return _elu(jnp.dot(flat, W3.T, precision=hp) + b3)


if __name__ == "__main__":
    key = jax.random.PRNGKey(0)
    k_obs, k_par = jax.random.split(key)

    nd = 20   # deliberately not a multiple of 8 to exercise the padding path
    obs = jax.random.normal(k_obs, (nd, TSTEPS * INPUT_SIZE), jnp.float32)

    torch_params = make_torch_params(k_par)
    kernel_params = build_kernel_params(torch_params)

    ref = reference_forward(obs, torch_params)

    # Default (single large tile) path.
    out = jax.block_until_ready(state_history_encoder(obs, kernel_params))
    # Multi-step grid path (small tile -> 3 grid steps) to exercise tiling.
    out_tiled = jax.block_until_ready(
        state_history_encoder(obs, kernel_params, block_rows=8))

    assert out.shape == (nd, OUTPUT_SIZE)
    # Tolerance leaves headroom for MXU default-precision f32 matmul passes.
    assert jnp.allclose(out, ref, atol=5e-3, rtol=5e-3)
    assert jnp.allclose(out_tiled, ref, atol=5e-3, rtol=5e-3)

    print("KERNEL_OK")
</pallas_src>

<mosaic_0001>
module attributes {stable_mosaic.version = 11 : i64} {
  func.func @she_kernel(%arg0: i32, %arg1: memref<24x320xf32, #tpu.memory_space<vmem>>, %arg2: memref<320x300xf32, #tpu.memory_space<vmem>>, %arg3: memref<1x300xf32, #tpu.memory_space<vmem>>, %arg4: memref<300x80xf32, #tpu.memory_space<vmem>>, %arg5: memref<1x80xf32, #tpu.memory_space<vmem>>, %arg6: memref<80x30xf32, #tpu.memory_space<vmem>>, %arg7: memref<1x30xf32, #tpu.memory_space<vmem>>, %arg8: memref<30x20xf32, #tpu.memory_space<vmem>>, %arg9: memref<1x20xf32, #tpu.memory_space<vmem>>, %arg10: memref<24x20xf32, #tpu.memory_space<vmem>>) attributes {dimension_semantics = [#tpu.dimension_semantics<parallel>], iteration_bounds = array<i64: 1>, scalar_prefetch = 0 : i64, scratch_operands = 0 : i64, tpu.core_type = #tpu.core_type<tc>, window_params = [{transform_indices = @transform_0, window_bounds = array<i64: 24, 320>}, {pipeline_mode = #tpu.pipeline_mode<synchronous>, transform_indices = @transform_1, window_bounds = array<i64: 320, 300>}, {pipeline_mode = #tpu.pipeline_mode<synchronous>, transform_indices = @transform_2, window_bounds = array<i64: 1, 300>}, {pipeline_mode = #tpu.pipeline_mode<synchronous>, transform_indices = @transform_3, window_bounds = array<i64: 300, 80>}, {pipeline_mode = #tpu.pipeline_mode<synchronous>, transform_indices = @transform_4, window_bounds = array<i64: 1, 80>}, {pipeline_mode = #tpu.pipeline_mode<synchronous>, transform_indices = @transform_5, window_bounds = array<i64: 80, 30>}, {pipeline_mode = #tpu.pipeline_mode<synchronous>, transform_indices = @transform_6, window_bounds = array<i64: 1, 30>}, {pipeline_mode = #tpu.pipeline_mode<synchronous>, transform_indices = @transform_7, window_bounds = array<i64: 30, 20>}, {pipeline_mode = #tpu.pipeline_mode<synchronous>, transform_indices = @transform_8, window_bounds = array<i64: 1, 20>}, {transform_indices = @transform_9, window_bounds = array<i64: 24, 20>}]} {
    %c0 = arith.constant 0 : index
    %c0_0 = arith.constant 0 : index
    %0 = vector.load %arg1[%c0, %c0_0] : memref<24x320xf32, #tpu.memory_space<vmem>>, vector<24x320xf32>
    %c0_1 = arith.constant 0 : index
    %c0_2 = arith.constant 0 : index
    %1 = vector.load %arg2[%c0_1, %c0_2] : memref<320x300xf32, #tpu.memory_space<vmem>>, vector<320x300xf32>
    %cst = arith.constant dense<0.000000e+00> : vector<24x300xf32>
    %2 = tpu.matmul %0, %1, %cst {dimension_numbers = #tpu.dot_dimension_numbers<[1], [0], [0], [1], [0, 0, 1, 1], [], []>} : vector<24x320xf32>, vector<320x300xf32>, vector<24x300xf32> -> vector<24x300xf32>
    %c0_3 = arith.constant 0 : index
    %c0_4 = arith.constant 0 : index
    %3 = vector.load %arg3[%c0_3, %c0_4] : memref<1x300xf32, #tpu.memory_space<vmem>>, vector<1x300xf32>
    %4 = vector.broadcast %3 : vector<1x300xf32> to vector<24x300xf32>
    %5 = arith.addf %2, %4 : vector<24x300xf32>
    %cst_5 = arith.constant 0.000000e+00 : f32
    %6 = vector.broadcast %cst_5 : f32 to vector<24x300xf32>
    %7 = arith.cmpf ogt, %5, %6 : vector<24x300xf32>
    %cst_6 = arith.constant 0.000000e+00 : f32
    %8 = vector.broadcast %cst_6 : f32 to vector<24x300xf32>
    %9 = arith.minimumf %5, %8 : vector<24x300xf32>
    %10 = math.exp %9 : vector<24x300xf32>
    %cst_7 = arith.constant 1.000000e+00 : f32
    %11 = vector.broadcast %cst_7 : f32 to vector<24x300xf32>
    %12 = arith.subf %10, %11 : vector<24x300xf32>
    %13 = arith.select %7, %5, %12 : vector<24x300xi1>, vector<24x300xf32>
    %c0_8 = arith.constant 0 : index
    %c0_9 = arith.constant 0 : index
    %14 = vector.load %arg4[%c0_8, %c0_9] : memref<300x80xf32, #tpu.memory_space<vmem>>, vector<300x80xf32>
    %cst_10 = arith.constant dense<0.000000e+00> : vector<24x80xf32>
    %15 = tpu.matmul %13, %14, %cst_10 {dimension_numbers = #tpu.dot_dimension_numbers<[1], [0], [0], [1], [0, 0, 1, 1], [], []>} : vector<24x300xf32>, vector<300x80xf32>, vector<24x80xf32> -> vector<24x80xf32>
    %c0_11 = arith.constant 0 : index
    %c0_12 = arith.constant 0 : index
    %16 = vector.load %arg5[%c0_11, %c0_12] : memref<1x80xf32, #tpu.memory_space<vmem>>, vector<1x80xf32>
    %17 = vector.broadcast %16 : vector<1x80xf32> to vector<24x80xf32>
    %18 = arith.addf %15, %17 : vector<24x80xf32>
    %cst_13 = arith.constant 0.000000e+00 : f32
    %19 = vector.broadcast %cst_13 : f32 to vector<24x80xf32>
    %20 = arith.cmpf ogt, %18, %19 : vector<24x80xf32>
    %cst_14 = arith.constant 0.000000e+00 : f32
    %21 = vector.broadcast %cst_14 : f32 to vector<24x80xf32>
    %22 = arith.minimumf %18, %21 : vector<24x80xf32>
    %23 = math.exp %22 : vector<24x80xf32>
    %cst_15 = arith.constant 1.000000e+00 : f32
    %24 = vector.broadcast %cst_15 : f32 to vector<24x80xf32>
    %25 = arith.subf %23, %24 : vector<24x80xf32>
    %26 = arith.select %20, %18, %25 : vector<24x80xi1>, vector<24x80xf32>
    %c0_16 = arith.constant 0 : index
    %c0_17 = arith.constant 0 : index
    %27 = vector.load %arg6[%c0_16, %c0_17] : memref<80x30xf32, #tpu.memory_space<vmem>>, vector<80x30xf32>
    %cst_18 = arith.constant dense<0.000000e+00> : vector<24x30xf32>
    %28 = tpu.matmul %26, %27, %cst_18 {dimension_numbers = #tpu.dot_dimension_numbers<[1], [0], [0], [1], [0, 0, 1, 1], [], []>} : vector<24x80xf32>, vector<80x30xf32>, vector<24x30xf32> -> vector<24x30xf32>
    %c0_19 = arith.constant 0 : index
    %c0_20 = arith.constant 0 : index
    %29 = vector.load %arg7[%c0_19, %c0_20] : memref<1x30xf32, #tpu.memory_space<vmem>>, vector<1x30xf32>
    %30 = vector.broadcast %29 : vector<1x30xf32> to vector<24x30xf32>
    %31 = arith.addf %28, %30 : vector<24x30xf32>
    %cst_21 = arith.constant 0.000000e+00 : f32
    %32 = vector.broadcast %cst_21 : f32 to vector<24x30xf32>
    %33 = arith.cmpf ogt, %31, %32 : vector<24x30xf32>
    %cst_22 = arith.constant 0.000000e+00 : f32
    %34 = vector.broadcast %cst_22 : f32 to vector<24x30xf32>
    %35 = arith.minimumf %31, %34 : vector<24x30xf32>
    %36 = math.exp %35 : vector<24x30xf32>
    %cst_23 = arith.constant 1.000000e+00 : f32
    %37 = vector.broadcast %cst_23 : f32 to vector<24x30xf32>
    %38 = arith.subf %36, %37 : vector<24x30xf32>
    %39 = arith.select %33, %31, %38 : vector<24x30xi1>, vector<24x30xf32>
    %c0_24 = arith.constant 0 : index
    %c0_25 = arith.constant 0 : index
    %40 = vector.load %arg8[%c0_24, %c0_25] : memref<30x20xf32, #tpu.memory_space<vmem>>, vector<30x20xf32>
    %cst_26 = arith.constant dense<0.000000e+00> : vector<24x20xf32>
    %41 = tpu.matmul %39, %40, %cst_26 {dimension_numbers = #tpu.dot_dimension_numbers<[1], [0], [0], [1], [0, 0, 1, 1], [], []>} : vector<24x30xf32>, vector<30x20xf32>, vector<24x20xf32> -> vector<24x20xf32>
    %c0_27 = arith.constant 0 : index
    %c0_28 = arith.constant 0 : index
    %42 = vector.load %arg9[%c0_27, %c0_28] : memref<1x20xf32, #tpu.memory_space<vmem>>, vector<1x20xf32>
    %43 = vector.broadcast %42 : vector<1x20xf32> to vector<24x20xf32>
    %44 = arith.addf %41, %43 : vector<24x20xf32>
    %cst_29 = arith.constant 0.000000e+00 : f32
    %45 = vector.broadcast %cst_29 : f32 to vector<24x20xf32>
    %46 = arith.cmpf ogt, %44, %45 : vector<24x20xf32>
    %cst_30 = arith.constant 0.000000e+00 : f32
    %47 = vector.broadcast %cst_30 : f32 to vector<24x20xf32>
    %48 = arith.minimumf %44, %47 : vector<24x20xf32>
    %49 = math.exp %48 : vector<24x20xf32>
    %cst_31 = arith.constant 1.000000e+00 : f32
    %50 = vector.broadcast %cst_31 : f32 to vector<24x20xf32>
    %51 = arith.subf %49, %50 : vector<24x20xf32>
    %52 = arith.select %46, %44, %51 : vector<24x20xi1>, vector<24x20xf32>
    %c0_32 = arith.constant 0 : index
    %c0_33 = arith.constant 0 : index
    %53 = vector.load %arg10[%c0_32, %c0_33] : memref<24x20xf32, #tpu.memory_space<vmem>>, vector<24x20xf32>
    tpu.vector_store %arg10[%c0_32, %c0_33], %52 {strides = array<i32>} : memref<24x20xf32, #tpu.memory_space<vmem>>, vector<24x20xf32>,
    return
  }
  func.func @transform_0(%arg0: i32) -> (i32, i32) {
    %c0_i32 = arith.constant 0 : i32
    %c0_i32_0 = arith.constant 0 : i32
    return %arg0, %c0_i32 : i32, i32
  }
  func.func @transform_1(%arg0: i32) -> (i32, i32) {
    %c0_i32 = arith.constant 0 : i32
    %c0_i32_0 = arith.constant 0 : i32
    %c0_i32_1 = arith.constant 0 : i32
    return %c0_i32, %c0_i32_0 : i32, i32
  }
  func.func @transform_2(%arg0: i32) -> (i32, i32) {
    %c0_i32 = arith.constant 0 : i32
    %c0_i32_0 = arith.constant 0 : i32
    %c0_i32_1 = arith.constant 0 : i32
    return %c0_i32, %c0_i32_0 : i32, i32
  }
  func.func @transform_3(%arg0: i32) -> (i32, i32) {
    %c0_i32 = arith.constant 0 : i32
    %c0_i32_0 = arith.constant 0 : i32
    %c0_i32_1 = arith.constant 0 : i32
    return %c0_i32, %c0_i32_0 : i32, i32
  }
  func.func @transform_4(%arg0: i32) -> (i32, i32) {
    %c0_i32 = arith.constant 0 : i32
    %c0_i32_0 = arith.constant 0 : i32
    %c0_i32_1 = arith.constant 0 : i32
    return %c0_i32, %c0_i32_0 : i32, i32
  }
  func.func @transform_5(%arg0: i32) -> (i32, i32) {
    %c0_i32 = arith.constant 0 : i32
    %c0_i32_0 = arith.constant 0 : i32
    %c0_i32_1 = arith.constant 0 : i32
    return %c0_i32, %c0_i32_0 : i32, i32
  }
  func.func @transform_6(%arg0: i32) -> (i32, i32) {
    %c0_i32 = arith.constant 0 : i32
    %c0_i32_0 = arith.constant 0 : i32
    %c0_i32_1 = arith.constant 0 : i32
    return %c0_i32, %c0_i32_0 : i32, i32
  }
  func.func @transform_7(%arg0: i32) -> (i32, i32) {
    %c0_i32 = arith.constant 0 : i32
    %c0_i32_0 = arith.constant 0 : i32
    %c0_i32_1 = arith.constant 0 : i32
    return %c0_i32, %c0_i32_0 : i32, i32
  }
  func.func @transform_8(%arg0: i32) -> (i32, i32) {
    %c0_i32 = arith.constant 0 : i32
    %c0_i32_0 = arith.constant 0 : i32
    %c0_i32_1 = arith.constant 0 : i32
    return %c0_i32, %c0_i32_0 : i32, i32
  }
  func.func @transform_9(%arg0: i32) -> (i32, i32) {
    %c0_i32 = arith.constant 0 : i32
    %c0_i32_0 = arith.constant 0 : i32
    return %arg0, %c0_i32 : i32, i32
  }
}

</mosaic_0001>

<llo_original>
// kernel: tpu_custom_call.1
$region0: #{tpu_custom_call.1}
  #allocation0 [shape = 'u32[]', space=smem, size = 0x4, offset = 0x4, fixed_abs, tag = 'smem constant byte address 0x4 - core index']
  #allocation1 [shape = 'u32[144,128]{1,0:T(1,128)}', space=vmem, size = 0x12000, scoped, tag = 'internal scratch']
  %s0 = inlined_call_operand.vmem [shape: f32[24,320], index: 0, kind: input, shape index: {}]
  %s1 = inlined_call_operand.vmem [shape: f32[320,300], index: 1, kind: input, shape index: {}]
  %s2 = inlined_call_operand.vmem [shape: f32[1,300], index: 2, kind: input, shape index: {}]
  %s3 = inlined_call_operand.vmem [shape: f32[300,80], index: 3, kind: input, shape index: {}]
  %s4 = inlined_call_operand.vmem [shape: f32[1,80], index: 4, kind: input, shape index: {}]
  %s5 = inlined_call_operand.vmem [shape: f32[80,30], index: 5, kind: input, shape index: {}]
  %s6 = inlined_call_operand.vmem [shape: f32[1,30], index: 6, kind: input, shape index: {}]
  %s7 = inlined_call_operand.vmem [shape: f32[30,20], index: 7, kind: input, shape index: {}]
  %s8 = inlined_call_operand.vmem [shape: f32[1,20], index: 8, kind: input, shape index: {}]
  %s9 = inlined_call_operand.hbm [shape: f32[24,20], index: 9, kind: output, shape index: {}]
  %s10 = sld [smem:[#allocation0]]
  $region46: #{tpu_custom_call.1} parent=0
    _
  %s12 = ssub.s32 1, %s10
  %s13 = scalar_select 0, %s12, %s10
  $region1: #{tpu_custom_call.1} parent=0
    #allocation2 [shape = 'u8[12288]{0}', space=vmem, size = 0x3000, scoped, tag = 'output window, operand 0, single buffered']
    #allocation3 [shape = 's32[1]{0}', space=sflag, size = 0x4, scoped, tag = 'scoped memory for tpu_custom_call.1']
    %14 = vsyncpa [#allocation3], 0
    // Predicated region
    $region2: #{tpu_custom_call.1} parent=1 // pred_check
      _
    $region3: #{tpu_custom_call.1} parent=1 // pred_check_branch
      %16 = sbr.rel (0) target = $region5
    $region4: #{tpu_custom_call.1} parent=1 // pred_region
      _
    $region5: #{tpu_custom_call.1} parent=1 // pred_fallthru
      _
    // Predicated region
    $region6: #{tpu_custom_call.1} parent=1 // pred_check
      _
    $region7: #{tpu_custom_call.1} parent=1 // pred_check_branch
      %18 = sbr.rel (0) target = $region9
    $region8: #{tpu_custom_call.1} parent=1 // pred_region
      _
    $region9: #{tpu_custom_call.1} parent=1 // pred_fallthru
      _
    // Predicated region
    $region10: #{tpu_custom_call.1} parent=1 // pred_check
      _
    $region11: #{tpu_custom_call.1} parent=1 // pred_check_branch
      %20 = sbr.rel (0) target = $region13
    $region12: #{tpu_custom_call.1} parent=1 // pred_region
      _
    $region13: #{tpu_custom_call.1} parent=1 // pred_fallthru
      _
    // Predicated region
    $region14: #{tpu_custom_call.1} parent=1 // pred_check
      _
    $region15: #{tpu_custom_call.1} parent=1 // pred_check_branch
      %22 = sbr.rel (0) target = $region17
    $region16: #{tpu_custom_call.1} parent=1 // pred_region
      _
    $region17: #{tpu_custom_call.1} parent=1 // pred_fallthru
      _
    // Predicated region
    $region18: #{tpu_custom_call.1} parent=1 // pred_check
      _
    $region19: #{tpu_custom_call.1} parent=1 // pred_check_branch
      %24 = sbr.rel (0) target = $region21
    $region20: #{tpu_custom_call.1} parent=1 // pred_region
      _
    $region21: #{tpu_custom_call.1} parent=1 // pred_fallthru
      _
    // Predicated region
    $region22: #{tpu_custom_call.1} parent=1 // pred_check
      _
    $region23: #{tpu_custom_call.1} parent=1 // pred_check_branch
      %26 = sbr.rel (0) target = $region25
    $region24: #{tpu_custom_call.1} parent=1 // pred_region
      _
    $region25: #{tpu_custom_call.1} parent=1 // pred_fallthru
      _
    // Predicated region
    $region26: #{tpu_custom_call.1} parent=1 // pred_check
      _
    $region27: #{tpu_custom_call.1} parent=1 // pred_check_branch
      %28 = sbr.rel (0) target = $region29
    $region28: #{tpu_custom_call.1} parent=1 // pred_region
      _
    $region29: #{tpu_custom_call.1} parent=1 // pred_fallthru
      _
    // Predicated region
    $region30: #{tpu_custom_call.1} parent=1 // pred_check
      _
    $region31: #{tpu_custom_call.1} parent=1 // pred_check_branch
      %30 = sbr.rel (0) target = $region33
    $region32: #{tpu_custom_call.1} parent=1 // pred_region
      _
    $region33: #{tpu_custom_call.1} parent=1 // pred_fallthru
      _
    // Predicated region
    $region34: #{tpu_custom_call.1} parent=1 // pred_check
      _
    $region35: #{tpu_custom_call.1} parent=1 // pred_check_branch
      %32 = sbr.rel (0) target = $region37
    $region36: #{tpu_custom_call.1} parent=1 // pred_region
      _
    $region37: #{tpu_custom_call.1} parent=1 // pred_fallthru
      _
    %v33 = vld [vmem:[%s0] sm:$0xff]
    %v34 = vld [vmem:[%s0 + $0x8] sm:$0xff]
    %v35 = vld [vmem:[%s0 + $0x10] sm:$0xff]
    %v36 = vld [vmem:[%s0 + $0x18] sm:$0xff]
    %v37 = vld [vmem:[%s0 + $0x20] sm:$0xff]
    %v38 = vld [vmem:[%s0 + $0x28] sm:$0xff]
    %v39 = vld [vmem:[%s0 + $0x30] sm:$0xff]
    %v40 = vld [vmem:[%s0 + $0x38] sm:$0xff]
    %v41 = vld [vmem:[%s0 + $0x40] sm:$0xff]
    %v42 = vld [vmem:[%s1] sm:$0xff]
    %v43 = vld [vmem:[%s1 + $0x8] sm:$0xff]
    %v44 = vld [vmem:[%s1 + $0x10] sm:$0xff]
    %v45 = vld [vmem:[%s1 + $0x18] sm:$0xff]
    %v46 = vld [vmem:[%s1 + $0x20] sm:$0xff]
    %v47 = vld [vmem:[%s1 + $0x28] sm:$0xff]
    %v48 = vld [vmem:[%s1 + $0x30] sm:$0xff]
    %v49 = vld [vmem:[%s1 + $0x38] sm:$0xff]
    %v50 = vld [vmem:[%s1 + $0x40] sm:$0xff]
    %v51 = vld [vmem:[%s1 + $0x48] sm:$0xff]
    %v52 = vld [vmem:[%s1 + $0x50] sm:$0xff]
    %v53 = vld [vmem:[%s1 + $0x58] sm:$0xff]
    %v54 = vld [vmem:[%s1 + $0x60] sm:$0xff]
    %v55 = vld [vmem:[%s1 + $0x68] sm:$0xff]
    %v56 = vld [vmem:[%s1 + $0x70] sm:$0xff]
    %v57 = vld [vmem:[%s1 + $0x78] sm:$0xff]
    %v58 = vld [vmem:[%s1 + $0x80] sm:$0xff]
    %v59 = vld [vmem:[%s1 + $0x88] sm:$0xff]
    %v60 = vld [vmem:[%s1 + $0x90] sm:$0xff]
    %v61 = vld [vmem:[%s1 + $0x98] sm:$0xff]
    %v62 = vld [vmem:[%s1 + $0xa0] sm:$0xff]
    %v63 = vld [vmem:[%s1 + $0xa8] sm:$0xff]
    %v64 = vld [vmem:[%s1 + $0xb0] sm:$0xff]
    %v65 = vld [vmem:[%s1 + $0xb8] sm:$0xff]
    %v66 = vld [vmem:[%s1 + $0xc0] sm:$0xff]
    %v67 = vld [vmem:[%s1 + $0xc8] sm:$0xff]
    %v68 = vld [vmem:[%s1 + $0xd0] sm:$0xff]
    %v69 = vld [vmem:[%s1 + $0xd8] sm:$0xff]
    %v70 = vld [vmem:[%s1 + $0xe0] sm:$0xff]
    %v71 = vld [vmem:[%s1 + $0xe8] sm:$0xff]
    %v72 = vld [vmem:[%s1 + $0xf0] sm:$0xff]
    %v73 = vld [vmem:[%s1 + $0xf8] sm:$0xff]
    %v74 = vld [vmem:[%s1 + $0x100] sm:$0xff]
    %v75 = vld [vmem:[%s1 + $0x108] sm:$0xff]
    %v76 = vld [vmem:[%s1 + $0x110] sm:$0xff]
    %v77 = vld [vmem:[%s1 + $0x118] sm:$0xff]
    %v78 = vld [vmem:[%s1 + $0x120] sm:$0xff]
    %v79 = vld [vmem:[%s1 + $0x128] sm:$0xff]
    %v80 = vld [vmem:[%s1 + $0x130] sm:$0xff]
    %v81 = vld [vmem:[%s1 + $0x138] sm:$0xff]
    %v82 = vld [vmem:[%s1 + $0x140] sm:$0xff]
    %v83 = vld [vmem:[%s1 + $0x148] sm:$0xff]
    %v84 = vld [vmem:[%s1 + $0x150] sm:$0xff]
    %v85 = vld [vmem:[%s1 + $0x158] sm:$0xff]
    %v86 = vld [vmem:[%s1 + $0x160] sm:$0xff]
    %v87 = vld [vmem:[%s1 + $0x168] sm:$0xff]
    %v88 = vld [vmem:[%s1 + $0x170] sm:$0xff]
    %v89 = vld [vmem:[%s1 + $0x178] sm:$0xff]
    %v90 = vld [vmem:[%s1 + $0x180] sm:$0xff]
    %v91 = vld [vmem:[%s1 + $0x188] sm:$0xff]
    %v92 = vld [vmem:[%s1 + $0x190] sm:$0xff]
    %v93 = vld [vmem:[%s1 + $0x198] sm:$0xff]
    %v94 = vld [vmem:[%s1 + $0x1a0] sm:$0xff]
    %v95 = vld [vmem:[%s1 + $0x1a8] sm:$0xff]
    %v96 = vld [vmem:[%s1 + $0x1b0] sm:$0xff]
    %v97 = vld [vmem:[%s1 + $0x1b8] sm:$0xff]
    %v98 = vld [vmem:[%s1 + $0x1c0] sm:$0xff]
    %v99 = vld [vmem:[%s1 + $0x1c8] sm:$0xff]
    %v100 = vld [vmem:[%s1 + $0x1d0] sm:$0xff]
    %v101 = vld [vmem:[%s1 + $0x1d8] sm:$0xff]
    %v102 = vld [vmem:[%s1 + $0x1e0] sm:$0xff]
    %v103 = vld [vmem:[%s1 + $0x1e8] sm:$0xff]
    %v104 = vld [vmem:[%s1 + $0x1f0] sm:$0xff]
    %v105 = vld [vmem:[%s1 + $0x1f8] sm:$0xff]
    %v106 = vld [vmem:[%s1 + $0x200] sm:$0xff]
    %v107 = vld [vmem:[%s1 + $0x208] sm:$0xff]
    %v108 = vld [vmem:[%s1 + $0x210] sm:$0xff]
    %v109 = vld [vmem:[%s1 + $0x218] sm:$0xff]
    %v110 = vld [vmem:[%s1 + $0x220] sm:$0xff]
    %v111 = vld [vmem:[%s1 + $0x228] sm:$0xff]
    %v112 = vld [vmem:[%s1 + $0x230] sm:$0xff]
    %v113 = vld [vmem:[%s1 + $0x238] sm:$0xff]
    %v114 = vld [vmem:[%s1 + $0x240] sm:$0xff]
    %v115 = vld [vmem:[%s1 + $0x248] sm:$0xff]
    %v116 = vld [vmem:[%s1 + $0x250] sm:$0xff]
    %v117 = vld [vmem:[%s1 + $0x258] sm:$0xff]
    %v118 = vld [vmem:[%s1 + $0x260] sm:$0xff]
    %v119 = vld [vmem:[%s1 + $0x268] sm:$0xff]
    %v120 = vld [vmem:[%s1 + $0x270] sm:$0xff]
    %v121 = vld [vmem:[%s1 + $0x278] sm:$0xff]
    %v122 = vld [vmem:[%s1 + $0x280] sm:$0xff]
    %v123 = vld [vmem:[%s1 + $0x288] sm:$0xff]
    %v124 = vld [vmem:[%s1 + $0x290] sm:$0xff]
    %v125 = vld [vmem:[%s1 + $0x298] sm:$0xff]
    %v126 = vld [vmem:[%s1 + $0x2a0] sm:$0xff]
    %v127 = vld [vmem:[%s1 + $0x2a8] sm:$0xff]
    %v128 = vld [vmem:[%s1 + $0x2b0] sm:$0xff]
    %v129 = vld [vmem:[%s1 + $0x2b8] sm:$0xff]
    %v130 = vld [vmem:[%s1 + $0x2c0] sm:$0xff]
    %v131 = vld [vmem:[%s1 + $0x2c8] sm:$0xff]
    %v132 = vld [vmem:[%s1 + $0x2d0] sm:$0xff]
    %v133 = vld [vmem:[%s1 + $0x2d8] sm:$0xff]
    %v134 = vld [vmem:[%s1 + $0x2e0] sm:$0xff]
    %v135 = vld [vmem:[%s1 + $0x2e8] sm:$0xff]
    %v136 = vld [vmem:[%s1 + $0x2f0] sm:$0xff]
    %v137 = vld [vmem:[%s1 + $0x2f8] sm:$0xff]
    %v138 = vld [vmem:[%s1 + $0x300] sm:$0xff]
    %v139 = vld [vmem:[%s1 + $0x308] sm:$0xff]
    %v140 = vld [vmem:[%s1 + $0x310] sm:$0xff]
    %v141 = vld [vmem:[%s1 + $0x318] sm:$0xff]
    %v142 = vld [vmem:[%s1 + $0x320] sm:$0xff]
    %v143 = vld [vmem:[%s1 + $0x328] sm:$0xff]
    %v144 = vld [vmem:[%s1 + $0x330] sm:$0xff]
    %v145 = vld [vmem:[%s1 + $0x338] sm:$0xff]
    %v146 = vld [vmem:[%s1 + $0x340] sm:$0xff]
    %v147 = vld [vmem:[%s1 + $0x348] sm:$0xff]
    %v148 = vld [vmem:[%s1 + $0x350] sm:$0xff]
    %v149 = vld [vmem:[%s1 + $0x358] sm:$0xff]
    %v150 = vld [vmem:[%s1 + $0x360] sm:$0xff]
    %v151 = vld [vmem:[%s1 + $0x368] sm:$0xff]
    %v152 = vld [vmem:[%s1 + $0x370] sm:$0xff]
    %v153 = vld [vmem:[%s1 + $0x378] sm:$0xff]
    %v154 = vld [vmem:[%s1 + $0x380] sm:$0xff]
    %v155 = vld [vmem:[%s1 + $0x388] sm:$0xff]
    %v156 = vld [vmem:[%s1 + $0x390] sm:$0xff]
    %v157 = vld [vmem:[%s1 + $0x398] sm:$0xff]
    %v158 = vld [vmem:[%s1 + $0x3a0] sm:$0xff]
    %v159 = vld [vmem:[%s1 + $0x3a8] sm:$0xff]
    %v160 = vld [vmem:[%s1 + $0x3b0] sm:$0xff]
    %v161 = vld [vmem:[%s1 + $0x3b8] sm:$0xff]
    %v162 = vld [vmem:[%s2] sm:$0x7]
    %v164 = vlaneseq
    %v165 = vshrl.u32 %v164, 7
    %v166 = vsub.s32 0, %v165
    %v167 = vrot.slane %v162, %v166
    %v168 = vlaneseq
    %v169 = vshrl.u32 %v168, 7
    %v170 = vsub.s32 1, %v169
    %v171 = vrot.slane %v162, %v170
    %v172 = vlaneseq
    %v173 = vshrl.u32 %v172, 7
    %v174 = vsub.s32 2, %v173
    %v175 = vrot.slane %v162, %v174
    %vm179 = vcmask 523264
    %v181 = vsel %vm179, %v35, 0
    %v184 = vsel %vm179, %v38, 0
    %v187 = vsel %vm179, %v41, 0
    %189 = vmatprep.subr.mxu0 %v43
    %190 = vmatpush1.msra.mxu0 %v42
    %191 = vmatprep.subr.mxu0 %v46
    %192 = vmatpush1.msra.mxu0 %v45
    %193 = vmatprep.subr.mxu0 %v49
    %194 = vmatpush1.msra.mxu0 %v48
    %195 = vmatprep.subr.mxu0 %v52
    %196 = vmatpush1.msra.mxu0 %v51
    %197 = vmatprep.subr.mxu0 %v55
    %198 = vmatpush1.msra.mxu0 %v54
    %199 = vmatprep.subr.mxu0 %v58
    %200 = vmatpush1.msra.mxu0 %v57
    %201 = vmatprep.subr.mxu0 %v61
    %202 = vmatpush1.msra.mxu0 %v60
    %203 = vmatprep.subr.mxu0 %v64
    %204 = vmatpush1.msra.mxu0 %v63
    %205 = vmatprep.subr.mxu0 %v67
    %206 = vmatpush1.msra.mxu0 %v66
    %207 = vmatprep.subr.mxu0 %v70
    %208 = vmatpush1.msra.mxu0 %v69
    %209 = vmatprep.subr.mxu0 %v73
    %210 = vmatpush1.msra.mxu0 %v72
    %211 = vmatprep.subr.mxu0 %v76
    %212 = vmatpush1.msra.mxu0 %v75
    %213 = vmatprep.subr.mxu0 %v79
    %214 = vmatpush1.msra.mxu0 %v78
    %215 = vmatprep.subr.mxu0 %v82
    %216 = vmatpush1.msra.mxu0 %v81
    %217 = vmatprep.subr.mxu0 %v85
    %218 = vmatpush1.msra.mxu0 %v84
    %219 = vmatprep.subr.mxu0 %v88
    %220 = vmatpush1.msra.mxu0 %v87
    %221 = vmatprep.subr.mxu0 %v91
    %222 = vmatpush1.msra.mxu0 %v90
    %223 = vmatprep.subr.mxu0 %v94
    %224 = vmatpush1.msra.mxu0 %v93
    %225 = vmatprep.subr.mxu0 %v97
    %226 = vmatpush1.msra.mxu0 %v96
    %227 = vmatprep.subr.mxu0 %v100
    %228 = vmatpush1.msra.mxu0 %v99
    %229 = vmatprep.subr.mxu0 %v103
    %230 = vmatpush1.msra.mxu0 %v102
    %231 = vmatprep.subr.mxu0 %v106
    %232 = vmatpush1.msra.mxu0 %v105
    %233 = vmatprep.subr.mxu0 %v109
    %234 = vmatpush1.msra.mxu0 %v108
    %235 = vmatprep.subr.mxu0 %v112
    %236 = vmatpush1.msra.mxu0 %v111
    %237 = vmatprep.subr.mxu0 %v115
    %238 = vmatpush1.msra.mxu0 %v114
    %239 = vmatprep.subr.mxu0 %v118
    %240 = vmatpush1.msra.mxu0 %v117
    %241 = vmatprep.subr.mxu0 %v121
    %242 = vmatpush1.msra.mxu0 %v120
    %243 = vmatprep.subr.mxu0 %v124
    %244 = vmatpush1.msra.mxu0 %v123
    %245 = vmatprep.subr.mxu0 %v127
    %246 = vmatpush1.msra.mxu0 %v126
    %247 = vmatprep.subr.mxu0 %v130
    %248 = vmatpush1.msra.mxu0 %v129
    %249 = vmatprep.subr.mxu0 %v133
    %250 = vmatpush1.msra.mxu0 %v132
    %251 = vmatprep.subr.mxu0 %v136
    %252 = vmatpush1.msra.mxu0 %v135
    %253 = vmatprep.mubr.f32.mxu0 %v34
    %254 = vmatmul.mubr.f32.gmra.mrb[0].mxu0 %v33
    %v255 = vpop.f32.mrb[0].mxu0
    %v256 = vadd.f32 %v167, %v255
    %v257 = vpop.f32.mrb[0].mxu0
    %v258 = vadd.f32 %v171, %v257
    %259 = vmatprep.mubr.f32.mxu0 %v37
    %260 = vmatmul.mubr.f32.gmra.mrb[0].mxu0 %v36
    %v261 = vpop.f32.mrb[0].mxu0
    %v262 = vadd.f32 %v167, %v261
    %v263 = vpop.f32.mrb[0].mxu0
    %v264 = vadd.f32 %v171, %v263
    %265 = vmatprep.mubr.f32.mxu0 %v40
    %266 = vmatmul.mubr.f32.gmra.mrb[0].mxu0 %v39
    %v267 = vpop.f32.mrb[0].mxu0
    %v268 = vadd.f32 %v167, %v267
    %v269 = vpop.f32.mrb[0].mxu0
    %v270 = vadd.f32 %v171, %v269
    %271 = vdwg.mxu0
    %272 = vmatprep.subr.mxu0 %v139
    %273 = vmatpush1.msra.mxu0 %v138
    %274 = vmatprep.subr.mxu0 %v142
    %275 = vmatpush1.msra.mxu0 %v141
    %276 = vmatprep.subr.mxu0 %v145
    %277 = vmatpush1.msra.mxu0 %v144
    %278 = vmatprep.subr.mxu0 %v148
    %279 = vmatpush1.msra.mxu0 %v147
    %280 = vmatprep.subr.mxu0 %v151
    %281 = vmatpush1.msra.mxu0 %v150
    %282 = vmatprep.subr.mxu0 %v154
    %283 = vmatpush1.msra.mxu0 %v153
    %284 = vmatprep.subr.mxu0 %v157
    %285 = vmatpush1.msra.mxu0 %v156
    %286 = vmatprep.subr.mxu0 %v160
    %287 = vmatpush1.msra.mxu0 %v159
    %288 = vmatprep.subr.mxu0 0.0
    %289 = vmatpush1.msra.mxu0 0.0
    %290 = vmatprep.subr.mxu0 0.0
    %291 = vmatpush1.msra.mxu0 0.0
    %292 = vmatprep.subr.mxu0 0.0
    %293 = vmatpush1.msra.mxu0 0.0
    %294 = vmatprep.subr.mxu0 0.0
    %295 = vmatpush1.msra.mxu0 0.0
    %296 = vmatprep.subr.mxu0 0.0
    %297 = vmatpush1.msra.mxu0 0.0
    %298 = vmatprep.subr.mxu0 0.0
    %299 = vmatpush1.msra.mxu0 0.0
    %300 = vmatprep.subr.mxu0 0.0
    %301 = vmatpush1.msra.mxu0 0.0
    %302 = vmatprep.subr.mxu0 0.0
    %303 = vmatpush1.msra.mxu0 0.0
    %304 = vmatprep.subr.mxu0 0.0
    %305 = vmatpush1.msra.mxu0 0.0
    %306 = vmatprep.subr.mxu0 0.0
    %307 = vmatpush1.msra.mxu0 0.0
    %308 = vmatprep.subr.mxu0 0.0
    %309 = vmatpush1.msra.mxu0 0.0
    %310 = vmatprep.subr.mxu0 0.0
    %311 = vmatpush1.msra.mxu0 0.0
    %312 = vmatprep.subr.mxu0 0.0
    %313 = vmatpush1.msra.mxu0 0.0
    %314 = vmatprep.subr.mxu0 0.0
    %315 = vmatpush1.msra.mxu0 0.0
    %316 = vmatprep.subr.mxu0 0.0
    %317 = vmatpush1.msra.mxu0 0.0
    %318 = vmatprep.subr.mxu0 0.0
    %319 = vmatpush1.msra.mxu0 0.0
    %320 = vmatprep.subr.mxu0 0.0
    %321 = vmatpush1.msra.mxu0 0.0
    %322 = vmatprep.subr.mxu0 0.0
    %323 = vmatpush1.msra.mxu0 0.0
    %324 = vmatprep.subr.mxu0 0.0
    %325 = vmatpush1.msra.mxu0 0.0
    %326 = vmatprep.subr.mxu0 0.0
    %327 = vmatpush1.msra.mxu0 0.0
    %328 = vmatprep.subr.mxu0 0.0
    %329 = vmatpush1.msra.mxu0 0.0
    %330 = vmatprep.subr.mxu0 0.0
    %331 = vmatpush1.msra.mxu0 0.0
    %332 = vmatprep.subr.mxu0 0.0
    %333 = vmatpush1.msra.mxu0 0.0
    %334 = vmatprep.subr.mxu0 0.0
    %335 = vmatpush1.msra.mxu0 0.0
    %336 = vmatprep.mubr.f32.mxu0 0.0
    %337 = vmatmul.mubr.f32.gmra.mrb[0].mxu0 %v181
    %v338 = vpop.f32.mrb[0].mxu0
    %v339 = vadd.f32 %v256, %v338
    %v340 = vpop.f32.mrb[0].mxu0
    %v341 = vadd.f32 %v258, %v340
    %342 = vmatprep.mubr.f32.mxu0 0.0
    %343 = vmatmul.mubr.f32.gmra.mrb[0].mxu0 %v184
    %v344 = vpop.f32.mrb[0].mxu0
    %v345 = vadd.f32 %v262, %v344
    %v346 = vpop.f32.mrb[0].mxu0
    %v347 = vadd.f32 %v264, %v346
    %348 = vmatprep.mubr.f32.mxu0 0.0
    %349 = vmatmul.mubr.f32.gmra.mrb[0].mxu0 %v187
    %v350 = vpop.f32.mrb[0].mxu0
    %v351 = vadd.f32 %v268, %v350
    %v352 = vpop.f32.mrb[0].mxu0
    %v353 = vadd.f32 %v270, %v352
    %354 = vdwg.mxu0
    %355 = vmatprep.subr.mxu0 0.0
    %356 = vmatpush1.msra.mxu0 %v44
    %357 = vmatprep.subr.mxu0 0.0
    %358 = vmatpush1.msra.mxu0 %v47
    %359 = vmatprep.subr.mxu0 0.0
    %360 = vmatpush1.msra.mxu0 %v50
    %361 = vmatprep.subr.mxu0 0.0
    %362 = vmatpush1.msra.mxu0 %v53
    %363 = vmatprep.subr.mxu0 0.0
    %364 = vmatpush1.msra.mxu0 %v56
    %365 = vmatprep.subr.mxu0 0.0
    %366 = vmatpush1.msra.mxu0 %v59
    %367 = vmatprep.subr.mxu0 0.0
    %368 = vmatpush1.msra.mxu0 %v62
    %369 = vmatprep.subr.mxu0 0.0
    %370 = vmatpush1.msra.mxu0 %v65
    %371 = vmatprep.subr.mxu0 0.0
    %372 = vmatpush1.msra.mxu0 %v68
    %373 = vmatprep.subr.mxu0 0.0
    %374 = vmatpush1.msra.mxu0 %v71
    %375 = vmatprep.subr.mxu0 0.0
    %376 = vmatpush1.msra.mxu0 %v74
    %377 = vmatprep.subr.mxu0 0.0
    %378 = vmatpush1.msra.mxu0 %v77
    %379 = vmatprep.subr.mxu0 0.0
    %380 = vmatpush1.msra.mxu0 %v80
    %381 = vmatprep.subr.mxu0 0.0
    %382 = vmatpush1.msra.mxu0 %v83
    %383 = vmatprep.subr.mxu0 0.0
    %384 = vmatpush1.msra.mxu0 %v86
    %385 = vmatprep.subr.mxu0 0.0
    %386 = vmatpush1.msra.mxu0 %v89
    %387 = vmatprep.subr.mxu0 0.0
    %388 = vmatpush1.msra.mxu0 %v92
    %389 = vmatprep.subr.mxu0 0.0
    %390 = vmatpush1.msra.mxu0 %v95
    %391 = vmatprep.subr.mxu0 0.0
    %392 = vmatpush1.msra.mxu0 %v98
    %393 = vmatprep.subr.mxu0 0.0
    %394 = vmatpush1.msra.mxu0 %v101
    %395 = vmatprep.subr.mxu0 0.0
    %396 = vmatpush1.msra.mxu0 %v104
    %397 = vmatprep.subr.mxu0 0.0
    %398 = vmatpush1.msra.mxu0 %v107
    %399 = vmatprep.subr.mxu0 0.0
    %400 = vmatpush1.msra.mxu0 %v110
    %401 = vmatprep.subr.mxu0 0.0
    %402 = vmatpush1.msra.mxu0 %v113
    %403 = vmatprep.subr.mxu0 0.0
    %404 = vmatpush1.msra.mxu0 %v116
    %405 = vmatprep.subr.mxu0 0.0
    %406 = vmatpush1.msra.mxu0 %v119
    %407 = vmatprep.subr.mxu0 0.0
    %408 = vmatpush1.msra.mxu0 %v122
    %409 = vmatprep.subr.mxu0 0.0
    %410 = vmatpush1.msra.mxu0 %v125
    %411 = vmatprep.subr.mxu0 0.0
    %412 = vmatpush1.msra.mxu0 %v128
    %413 = vmatprep.subr.mxu0 0.0
    %414 = vmatpush1.msra.mxu0 %v131
    %415 = vmatprep.subr.mxu0 0.0
    %416 = vmatpush1.msra.mxu0 %v134
    %417 = vmatprep.subr.mxu0 0.0
    %418 = vmatpush1.msra.mxu0 %v137
    %419 = vmatprep.mubr.f32.mxu0 %v34
    %420 = vmatmul.mubr.f32.gmra.mrb[0].mxu0 %v33
    %v421 = vpop.f32.mrb[0].mxu0
    %v422 = vadd.f32 %v175, %v421
    %v423 = vpop.f32.mrb[0].mxu0
    %424 = vmatprep.mubr.f32.mxu0 %v37
    %425 = vmatmul.mubr.f32.gmra.mrb[0].mxu0 %v36
    %v426 = vpop.f32.mrb[0].mxu0
    %v427 = vadd.f32 %v175, %v426
    %v428 = vpop.f32.mrb[0].mxu0
    %429 = vmatprep.mubr.f32.mxu0 %v40
    %430 = vmatmul.mubr.f32.gmra.mrb[0].mxu0 %v39
    %v431 = vpop.f32.mrb[0].mxu0
    %v432 = vadd.f32 %v175, %v431
    %v433 = vpop.f32.mrb[0].mxu0
    %434 = vdwg.mxu0
    %435 = vmatprep.subr.mxu0 0.0
    %436 = vmatpush1.msra.mxu0 %v140
    %437 = vmatprep.subr.mxu0 0.0
    %438 = vmatpush1.msra.mxu0 %v143
    %439 = vmatprep.subr.mxu0 0.0
    %440 = vmatpush1.msra.mxu0 %v146
    %441 = vmatprep.subr.mxu0 0.0
    %442 = vmatpush1.msra.mxu0 %v149
    %443 = vmatprep.subr.mxu0 0.0
    %444 = vmatpush1.msra.mxu0 %v152
    %445 = vmatprep.subr.mxu0 0.0
    %446 = vmatpush1.msra.mxu0 %v155
    %447 = vmatprep.subr.mxu0 0.0
    %448 = vmatpush1.msra.mxu0 %v158
    %449 = vmatprep.subr.mxu0 0.0
    %450 = vmatpush1.msra.mxu0 %v161
    %451 = vmatprep.subr.mxu0 0.0
    %452 = vmatpush1.msra.mxu0 0.0
    %453 = vmatprep.subr.mxu0 0.0
    %454 = vmatpush1.msra.mxu0 0.0
    %455 = vmatprep.subr.mxu0 0.0
    %456 = vmatpush1.msra.mxu0 0.0
    %457 = vmatprep.subr.mxu0 0.0
    %458 = vmatpush1.msra.mxu0 0.0
    %459 = vmatprep.subr.mxu0 0.0
    %460 = vmatpush1.msra.mxu0 0.0
    %461 = vmatprep.subr.mxu0 0.0
    %462 = vmatpush1.msra.mxu0 0.0
    %463 = vmatprep.subr.mxu0 0.0
    %464 = vmatpush1.msra.mxu0 0.0
    %465 = vmatprep.subr.mxu0 0.0
    %466 = vmatpush1.msra.mxu0 0.0
    %467 = vmatprep.subr.mxu0 0.0
    %468 = vmatpush1.msra.mxu0 0.0
    %469 = vmatprep.subr.mxu0 0.0
    %470 = vmatpush1.msra.mxu0 0.0
    %471 = vmatprep.subr.mxu0 0.0
    %472 = vmatpush1.msra.mxu0 0.0
    %473 = vmatprep.subr.mxu0 0.0
    %474 = vmatpush1.msra.mxu0 0.0
    %475 = vmatprep.subr.mxu0 0.0
    %476 = vmatpush1.msra.mxu0 0.0
    %477 = vmatprep.subr.mxu0 0.0
    %478 = vmatpush1.msra.mxu0 0.0
    %479 = vmatprep.subr.mxu0 0.0
    %480 = vmatpush1.msra.mxu0 0.0
    %481 = vmatprep.subr.mxu0 0.0
    %482 = vmatpush1.msra.mxu0 0.0
    %483 = vmatprep.subr.mxu0 0.0
    %484 = vmatpush1.msra.mxu0 0.0
    %485 = vmatprep.subr.mxu0 0.0
    %486 = vmatpush1.msra.mxu0 0.0
    %487 = vmatprep.subr.mxu0 0.0
    %488 = vmatpush1.msra.mxu0 0.0
    %489 = vmatprep.subr.mxu0 0.0
    %490 = vmatpush1.msra.mxu0 0.0
    %491 = vmatprep.subr.mxu0 0.0
    %492 = vmatpush1.msra.mxu0 0.0
    %493 = vmatprep.subr.mxu0 0.0
    %494 = vmatpush1.msra.mxu0 0.0
    %495 = vmatprep.subr.mxu0 0.0
    %496 = vmatpush1.msra.mxu0 0.0
    %497 = vmatprep.subr.mxu0 0.0
    %498 = vmatpush1.msra.mxu0 0.0
    %499 = vmatprep.mubr.f32.mxu0 0.0
    %500 = vmatmul.mubr.f32.gmra.mrb[0].mxu0 %v181
    %v501 = vpop.f32.mrb[0].mxu0
    %v502 = vadd.f32 %v422, %v501
    %v503 = vpop.f32.mrb[0].mxu0
    %504 = vmatprep.mubr.f32.mxu0 0.0
    %505 = vmatmul.mubr.f32.gmra.mrb[0].mxu0 %v184
    %v506 = vpop.f32.mrb[0].mxu0
    %v507 = vadd.f32 %v427, %v506
    %v508 = vpop.f32.mrb[0].mxu0
    %509 = vmatprep.mubr.f32.mxu0 0.0
    %510 = vmatmul.mubr.f32.gmra.mrb[0].mxu0 %v187
    %v511 = vpop.f32.mrb[0].mxu0
    %v512 = vadd.f32 %v432, %v511
    %v513 = vpop.f32.mrb[0].mxu0
    %514 = vdwg.mxu0
    %vm515 = vcmp.gt.f32.partialorder %v339, 0.0
    %vm516 = vcmp.gt.f32.partialorder %v341, 0.0
    %vm517 = vcmp.gt.f32.partialorder %v502, 0.0
    %vm518 = vcmp.gt.f32.partialorder %v345, 0.0
    %vm519 = vcmp.gt.f32.partialorder %v347, 0.0
    %vm520 = vcmp.gt.f32.partialorder %v507, 0.0
    %vm521 = vcmp.gt.f32.partialorder %v351, 0.0
    %vm522 = vcmp.gt.f32.partialorder %v353, 0.0
    %vm523 = vcmp.gt.f32.partialorder %v512, 0.0
    %v524 = vmin.f32 %v339, 0.0
    %v525 = vmin.f32 %v341, 0.0
    %v526 = vmin.f32 %v502, 0.0
    %v527 = vmin.f32 %v345, 0.0
    %v528 = vmin.f32 %v347, 0.0
    %v529 = vmin.f32 %v507, 0.0
    %v530 = vmin.f32 %v351, 0.0
    %v531 = vmin.f32 %v353, 0.0
    %v532 = vmin.f32 %v512, 0.0
    %v533 = vmul.f32 %v524, 1.442695
    %v534 = vpow.pop %v533
    %v535 = vmul.f32 %v525, 1.442695
    %v536 = vpow.pop %v535
    %v537 = vmul.f32 %v526, 1.442695
    %v538 = vpow.pop %v537
    %v539 = vmul.f32 %v527, 1.442695
    %v540 = vpow.pop %v539
    %v541 = vmul.f32 %v528, 1.442695
    %v542 = vpow.pop %v541
    %v543 = vmul.f32 %v529, 1.442695
    %v544 = vpow.pop %v543
    %v545 = vmul.f32 %v530, 1.442695
    %v546 = vpow.pop %v545
    %v547 = vmul.f32 %v531, 1.442695
    %v548 = vpow.pop %v547
    %v549 = vmul.f32 %v532, 1.442695
    %v550 = vpow.pop %v549
    %v551 = vsub.f32 %v534, 1.0
    %v552 = vsub.f32 %v536, 1.0
    %v553 = vsub.f32 %v538, 1.0
    %v554 = vsub.f32 %v540, 1.0
    %v555 = vsub.f32 %v542, 1.0
    %v556 = vsub.f32 %v544, 1.0
    %v557 = vsub.f32 %v546, 1.0
    %v558 = vsub.f32 %v548, 1.0
    %v559 = vsub.f32 %v550, 1.0
    %v560 = vsel %vm515, %v339, %v551
    %v561 = vsel %vm516, %v341, %v552
    %v562 = vsel %vm517, %v502, %v553
    %v563 = vsel %vm518, %v345, %v554
    %v564 = vsel %vm519, %v347, %v555
    %v565 = vsel %vm520, %v507, %v556
    %v566 = vsel %vm521, %v351, %v557
    %v567 = vsel %vm522, %v353, %v558
    %v568 = vsel %vm523, %v512, %v559
    %v569 = vld [vmem:[%s3] sm:$0xff]
    %v570 = vld [vmem:[%s3 + $0x8] sm:$0xff]
    %v571 = vld [vmem:[%s3 + $0x10] sm:$0xff]
    %v572 = vld [vmem:[%s3 + $0x18] sm:$0xff]
    %v573 = vld [vmem:[%s3 + $0x20] sm:$0xff]
    %v574 = vld [vmem:[%s3 + $0x28] sm:$0xff]
    %v575 = vld [vmem:[%s3 + $0x30] sm:$0xff]
    %v576 = vld [vmem:[%s3 + $0x38] sm:$0xff]
    %v577 = vld [vmem:[%s3 + $0x40] sm:$0xff]
    %v578 = vld [vmem:[%s3 + $0x48] sm:$0xff]
    %v579 = vld [vmem:[%s3 + $0x50] sm:$0xff]
    %v580 = vld [vmem:[%s3 + $0x58] sm:$0xff]
    %v581 = vld [vmem:[%s3 + $0x60] sm:$0xff]
    %v582 = vld [vmem:[%s3 + $0x68] sm:$0xff]
    %v583 = vld [vmem:[%s3 + $0x70] sm:$0xff]
    %v584 = vld [vmem:[%s3 + $0x78] sm:$0xff]
    %v585 = vld [vmem:[%s3 + $0x80] sm:$0xff]
    %v586 = vld [vmem:[%s3 + $0x88] sm:$0xff]
    %v587 = vld [vmem:[%s3 + $0x90] sm:$0xff]
    %v588 = vld [vmem:[%s3 + $0x98] sm:$0xff]
    %v589 = vld [vmem:[%s3 + $0xa0] sm:$0xff]
    %v590 = vld [vmem:[%s3 + $0xa8] sm:$0xff]
    %v591 = vld [vmem:[%s3 + $0xb0] sm:$0xff]
    %v592 = vld [vmem:[%s3 + $0xb8] sm:$0xff]
    %v593 = vld [vmem:[%s3 + $0xc0] sm:$0xff]
    %v594 = vld [vmem:[%s3 + $0xc8] sm:$0xff]
    %v595 = vld [vmem:[%s3 + $0xd0] sm:$0xff]
    %v596 = vld [vmem:[%s3 + $0xd8] sm:$0xff]
    %v597 = vld [vmem:[%s3 + $0xe0] sm:$0xff]
    %v598 = vld [vmem:[%s3 + $0xe8] sm:$0xff]
    %v599 = vld [vmem:[%s3 + $0xf0] sm:$0xff]
    %v600 = vld [vmem:[%s3 + $0xf8] sm:$0xff]
    %v601 = vld [vmem:[%s3 + $0x100] sm:$0xff]
    %v602 = vld [vmem:[%s3 + $0x108] sm:$0xff]
    %v603 = vld [vmem:[%s3 + $0x110] sm:$0xff]
    %v604 = vld [vmem:[%s3 + $0x118] sm:$0xff]
    %v605 = vld [vmem:[%s3 + $0x120] sm:$0xff]
    %v606 = vld [vmem:[%s3 + $0x128] sm:$0xf]
    %v607 = vld [vmem:[%s4] sm:$0x1]
    %v609 = vlaneseq
    %v610 = vshrl.u32 %v609, 7
    %v611 = vsub.s32 0, %v610
    %v612 = vrot.slane %v607, %v611
    %vm614 = vcmask 359424
    %v616 = vsel %vm614, %v562, 0
    %v619 = vsel %vm614, %v565, 0
    %v622 = vsel %vm614, %v568, 0
    %vm624 = vcmask 1043456
    %v626 = vsel %vm624, %v606, 0
    %628 = vmatprep.subr.mxu0 0.0
    %629 = vmatpush1.msra.mxu0 %v569
    %630 = vmatprep.subr.mxu0 0.0
    %631 = vmatpush1.msra.mxu0 %v570
    %632 = vmatprep.subr.mxu0 0.0
    %633 = vmatpush1.msra.mxu0 %v571
    %634 = vmatprep.subr.mxu0 0.0
    %635 = vmatpush1.msra.mxu0 %v572
    %636 = vmatprep.subr.mxu0 0.0
    %637 = vmatpush1.msra.mxu0 %v573
    %638 = vmatprep.subr.mxu0 0.0
    %639 = vmatpush1.msra.mxu0 %v574
    %640 = vmatprep.subr.mxu0 0.0
    %641 = vmatpush1.msra.mxu0 %v575
    %642 = vmatprep.subr.mxu0 0.0
    %643 = vmatpush1.msra.mxu0 %v576
    %644 = vmatprep.subr.mxu0 0.0
    %645 = vmatpush1.msra.mxu0 %v577
    %646 = vmatprep.subr.mxu0 0.0
    %647 = vmatpush1.msra.mxu0 %v578
    %648 = vmatprep.subr.mxu0 0.0
    %649 = vmatpush1.msra.mxu0 %v579
    %650 = vmatprep.subr.mxu0 0.0
    %651 = vmatpush1.msra.mxu0 %v580
    %652 = vmatprep.subr.mxu0 0.0
    %653 = vmatpush1.msra.mxu0 %v581
    %654 = vmatprep.subr.mxu0 0.0
    %655 = vmatpush1.msra.mxu0 %v582
    %656 = vmatprep.subr.mxu0 0.0
    %657 = vmatpush1.msra.mxu0 %v583
    %658 = vmatprep.subr.mxu0 0.0
    %659 = vmatpush1.msra.mxu0 %v584
    %660 = vmatprep.subr.mxu0 0.0
    %661 = vmatpush1.msra.mxu0 %v585
    %662 = vmatprep.subr.mxu0 0.0
    %663 = vmatpush1.msra.mxu0 %v586
    %664 = vmatprep.subr.mxu0 0.0
    %665 = vmatpush1.msra.mxu0 %v587
    %666 = vmatprep.subr.mxu0 0.0
    %667 = vmatpush1.msra.mxu0 %v588
    %668 = vmatprep.subr.mxu0 0.0
    %669 = vmatpush1.msra.mxu0 %v589
    %670 = vmatprep.subr.mxu0 0.0
    %671 = vmatpush1.msra.mxu0 %v590
    %672 = vmatprep.subr.mxu0 0.0
    %673 = vmatpush1.msra.mxu0 %v591
    %674 = vmatprep.subr.mxu0 0.0
    %675 = vmatpush1.msra.mxu0 %v592
    %676 = vmatprep.subr.mxu0 0.0
    %677 = vmatpush1.msra.mxu0 %v593
    %678 = vmatprep.subr.mxu0 0.0
    %679 = vmatpush1.msra.mxu0 %v594
    %680 = vmatprep.subr.mxu0 0.0
    %681 = vmatpush1.msra.mxu0 %v595
    %682 = vmatprep.subr.mxu0 0.0
    %683 = vmatpush1.msra.mxu0 %v596
    %684 = vmatprep.subr.mxu0 0.0
    %685 = vmatpush1.msra.mxu0 %v597
    %686 = vmatprep.subr.mxu0 0.0
    %687 = vmatpush1.msra.mxu0 %v598
    %688 = vmatprep.subr.mxu0 0.0
    %689 = vmatpush1.msra.mxu0 %v599
    %690 = vmatprep.subr.mxu0 0.0
    %691 = vmatpush1.msra.mxu0 %v600
    %692 = vmatprep.mubr.f32.mxu0 %v561
    %693 = vmatmul.mubr.f32.gmra.mrb[0].mxu0 %v560
    %v694 = vpop.f32.mrb[0].mxu0
    %v695 = vadd.f32 %v612, %v694
    %v696 = vpop.f32.mrb[0].mxu0
    %697 = vmatprep.mubr.f32.mxu0 %v564
    %698 = vmatmul.mubr.f32.gmra.mrb[0].mxu0 %v563
    %v699 = vpop.f32.mrb[0].mxu0
    %v700 = vadd.f32 %v612, %v699
    %v701 = vpop.f32.mrb[0].mxu0
    %702 = vmatprep.mubr.f32.mxu0 %v567
    %703 = vmatmul.mubr.f32.gmra.mrb[0].mxu0 %v566
    %v704 = vpop.f32.mrb[0].mxu0
    %v705 = vadd.f32 %v612, %v704
    %v706 = vpop.f32.mrb[0].mxu0
    %707 = vdwg.mxu0
    %708 = vmatprep.subr.mxu0 0.0
    %709 = vmatpush1.msra.mxu0 %v601
    %710 = vmatprep.subr.mxu0 0.0
    %711 = vmatpush1.msra.mxu0 %v602
    %712 = vmatprep.subr.mxu0 0.0
    %713 = vmatpush1.msra.mxu0 %v603
    %714 = vmatprep.subr.mxu0 0.0
    %715 = vmatpush1.msra.mxu0 %v604
    %716 = vmatprep.subr.mxu0 0.0
    %717 = vmatpush1.msra.mxu0 %v605
    %718 = vmatprep.subr.mxu0 0.0
    %719 = vmatpush1.msra.mxu0 %v626
    %720 = vmatprep.subr.mxu0 0.0
    %721 = vmatpush1.msra.mxu0 0.0
    %722 = vmatprep.subr.mxu0 0.0
    %723 = vmatpush1.msra.mxu0 0.0
    %724 = vmatprep.subr.mxu0 0.0
    %725 = vmatpush1.msra.mxu0 0.0
    %726 = vmatprep.subr.mxu0 0.0
    %727 = vmatpush1.msra.mxu0 0.0
    %728 = vmatprep.subr.mxu0 0.0
    %729 = vmatpush1.msra.mxu0 0.0
    %730 = vmatprep.subr.mxu0 0.0
    %731 = vmatpush1.msra.mxu0 0.0
    %732 = vmatprep.subr.mxu0 0.0
    %733 = vmatpush1.msra.mxu0 0.0
    %734 = vmatprep.subr.mxu0 0.0
    %735 = vmatpush1.msra.mxu0 0.0
    %736 = vmatprep.subr.mxu0 0.0
    %737 = vmatpush1.msra.mxu0 0.0
    %738 = vmatprep.subr.mxu0 0.0
    %739 = vmatpush1.msra.mxu0 0.0
    %740 = vmatprep.subr.mxu0 0.0
    %741 = vmatpush1.msra.mxu0 0.0
    %742 = vmatprep.subr.mxu0 0.0
    %743 = vmatpush1.msra.mxu0 0.0
    %744 = vmatprep.subr.mxu0 0.0
    %745 = vmatpush1.msra.mxu0 0.0
    %746 = vmatprep.subr.mxu0 0.0
    %747 = vmatpush1.msra.mxu0 0.0
    %748 = vmatprep.subr.mxu0 0.0
    %749 = vmatpush1.msra.mxu0 0.0
    %750 = vmatprep.subr.mxu0 0.0
    %751 = vmatpush1.msra.mxu0 0.0
    %752 = vmatprep.subr.mxu0 0.0
    %753 = vmatpush1.msra.mxu0 0.0
    %754 = vmatprep.subr.mxu0 0.0
    %755 = vmatpush1.msra.mxu0 0.0
    %756 = vmatprep.subr.mxu0 0.0
    %757 = vmatpush1.msra.mxu0 0.0
    %758 = vmatprep.subr.mxu0 0.0
    %759 = vmatpush1.msra.mxu0 0.0
    %760 = vmatprep.subr.mxu0 0.0
    %761 = vmatpush1.msra.mxu0 0.0
    %762 = vmatprep.subr.mxu0 0.0
    %763 = vmatpush1.msra.mxu0 0.0
    %764 = vmatprep.subr.mxu0 0.0
    %765 = vmatpush1.msra.mxu0 0.0
    %766 = vmatprep.subr.mxu0 0.0
    %767 = vmatpush1.msra.mxu0 0.0
    %768 = vmatprep.subr.mxu0 0.0
    %769 = vmatpush1.msra.mxu0 0.0
    %770 = vmatprep.subr.mxu0 0.0
    %771 = vmatpush1.msra.mxu0 0.0
    %772 = vmatprep.mubr.f32.mxu0 0.0
    %773 = vmatmul.mubr.f32.gmra.mrb[0].mxu0 %v616
    %v774 = vpop.f32.mrb[0].mxu0
    %v775 = vadd.f32 %v695, %v774
    %v776 = vpop.f32.mrb[0].mxu0
    %777 = vmatprep.mubr.f32.mxu0 0.0
    %778 = vmatmul.mubr.f32.gmra.mrb[0].mxu0 %v619
    %v779 = vpop.f32.mrb[0].mxu0
    %v780 = vadd.f32 %v700, %v779
    %v781 = vpop.f32.mrb[0].mxu0
    %782 = vmatprep.mubr.f32.mxu0 0.0
    %783 = vmatmul.mubr.f32.gmra.mrb[0].mxu0 %v622
    %v784 = vpop.f32.mrb[0].mxu0
    %v785 = vadd.f32 %v705, %v784
    %v786 = vpop.f32.mrb[0].mxu0
    %787 = vdwg.mxu0
    %vm788 = vcmp.gt.f32.partialorder %v775, 0.0
    %vm789 = vcmp.gt.f32.partialorder %v780, 0.0
    %vm790 = vcmp.gt.f32.partialorder %v785, 0.0
    %v791 = vmin.f32 %v775, 0.0
    %v792 = vmin.f32 %v780, 0.0
    %v793 = vmin.f32 %v785, 0.0
    %v794 = vmul.f32 %v791, 1.442695
    %v795 = vpow.pop %v794
    %v796 = vmul.f32 %v792, 1.442695
    %v797 = vpow.pop %v796
    %v798 = vmul.f32 %v793, 1.442695
    %v799 = vpow.pop %v798
    %v800 = vsub.f32 %v795, 1.0
    %v801 = vsub.f32 %v797, 1.0
    %v802 = vsub.f32 %v799, 1.0
    %v803 = vsel %vm788, %v775, %v800
    %v804 = vsel %vm789, %v780, %v801
    %v805 = vsel %vm790, %v785, %v802
    %v806 = vld [vmem:[%s5] sm:$0xff]
    %v807 = vld [vmem:[%s5 + $0x8] sm:$0xff]
    %v808 = vld [vmem:[%s5 + $0x10] sm:$0xff]
    %v809 = vld [vmem:[%s5 + $0x18] sm:$0xff]
    %v810 = vld [vmem:[%s5 + $0x20] sm:$0xff]
    %v811 = vld [vmem:[%s5 + $0x28] sm:$0xff]
    %v812 = vld [vmem:[%s5 + $0x30] sm:$0xff]
    %v813 = vld [vmem:[%s5 + $0x38] sm:$0xff]
    %v814 = vld [vmem:[%s5 + $0x40] sm:$0xff]
    %v815 = vld [vmem:[%s5 + $0x48] sm:$0xff]
    %v816 = vld [vmem:[%s6] sm:$0x1]
    %v818 = vlaneseq
    %v819 = vshrl.u32 %v818, 7
    %v820 = vsub.s32 0, %v819
    %v821 = vrot.slane %v816, %v820
    %vm823 = vcmask 654336
    %v825 = vsel %vm823, %v803, 0
    %v828 = vsel %vm823, %v804, 0
    %v831 = vsel %vm823, %v805, 0
    %833 = vmatprep.subr.mxu0 0.0
    %834 = vmatpush1.msra.mxu0 %v806
    %835 = vmatprep.subr.mxu0 0.0
    %836 = vmatpush1.msra.mxu0 %v807
    %837 = vmatprep.subr.mxu0 0.0
    %838 = vmatpush1.msra.mxu0 %v808
    %839 = vmatprep.subr.mxu0 0.0
    %840 = vmatpush1.msra.mxu0 %v809
    %841 = vmatprep.subr.mxu0 0.0
    %842 = vmatpush1.msra.mxu0 %v810
    %843 = vmatprep.subr.mxu0 0.0
    %844 = vmatpush1.msra.mxu0 %v811
    %845 = vmatprep.subr.mxu0 0.0
    %846 = vmatpush1.msra.mxu0 %v812
    %847 = vmatprep.subr.mxu0 0.0
    %848 = vmatpush1.msra.mxu0 %v813
    %849 = vmatprep.subr.mxu0 0.0
    %850 = vmatpush1.msra.mxu0 %v814
    %851 = vmatprep.subr.mxu0 0.0
    %852 = vmatpush1.msra.mxu0 %v815
    %853 = vmatprep.subr.mxu0 0.0
    %854 = vmatpush1.msra.mxu0 0.0
    %855 = vmatprep.subr.mxu0 0.0
    %856 = vmatpush1.msra.mxu0 0.0
    %857 = vmatprep.subr.mxu0 0.0
    %858 = vmatpush1.msra.mxu0 0.0
    %859 = vmatprep.subr.mxu0 0.0
    %860 = vmatpush1.msra.mxu0 0.0
    %861 = vmatprep.subr.mxu0 0.0
    %862 = vmatpush1.msra.mxu0 0.0
    %863 = vmatprep.subr.mxu0 0.0
    %864 = vmatpush1.msra.mxu0 0.0
    %865 = vmatprep.subr.mxu0 0.0
    %866 = vmatpush1.msra.mxu0 0.0
    %867 = vmatprep.subr.mxu0 0.0
    %868 = vmatpush1.msra.mxu0 0.0
    %869 = vmatprep.subr.mxu0 0.0
    %870 = vmatpush1.msra.mxu0 0.0
    %871 = vmatprep.subr.mxu0 0.0
    %872 = vmatpush1.msra.mxu0 0.0
    %873 = vmatprep.subr.mxu0 0.0
    %874 = vmatpush1.msra.mxu0 0.0
    %875 = vmatprep.subr.mxu0 0.0
    %876 = vmatpush1.msra.mxu0 0.0
    %877 = vmatprep.subr.mxu0 0.0
    %878 = vmatpush1.msra.mxu0 0.0
    %879 = vmatprep.subr.mxu0 0.0
    %880 = vmatpush1.msra.mxu0 0.0
    %881 = vmatprep.subr.mxu0 0.0
    %882 = vmatpush1.msra.mxu0 0.0
    %883 = vmatprep.subr.mxu0 0.0
    %884 = vmatpush1.msra.mxu0 0.0
    %885 = vmatprep.subr.mxu0 0.0
    %886 = vmatpush1.msra.mxu0 0.0
    %887 = vmatprep.subr.mxu0 0.0
    %888 = vmatpush1.msra.mxu0 0.0
    %889 = vmatprep.subr.mxu0 0.0
    %890 = vmatpush1.msra.mxu0 0.0
    %891 = vmatprep.subr.mxu0 0.0
    %892 = vmatpush1.msra.mxu0 0.0
    %893 = vmatprep.subr.mxu0 0.0
    %894 = vmatpush1.msra.mxu0 0.0
    %895 = vmatprep.subr.mxu0 0.0
    %896 = vmatpush1.msra.mxu0 0.0
    %897 = vmatprep.mubr.f32.mxu0 0.0
    %898 = vmatmul.mubr.f32.gmra.mrb[0].mxu0 %v825
    %v899 = vpop.f32.mrb[0].mxu0
    %v900 = vadd.f32 %v821, %v899
    %v901 = vpop.f32.mrb[0].mxu0
    %902 = vmatprep.mubr.f32.mxu0 0.0
    %903 = vmatmul.mubr.f32.gmra.mrb[0].mxu0 %v828
    %v904 = vpop.f32.mrb[0].mxu0
    %v905 = vadd.f32 %v821, %v904
    %v906 = vpop.f32.mrb[0].mxu0
    %907 = vmatprep.mubr.f32.mxu0 0.0
    %908 = vmatmul.mubr.f32.gmra.mrb[0].mxu0 %v831
    %v909 = vpop.f32.mrb[0].mxu0
    %v910 = vadd.f32 %v821, %v909
    %v911 = vpop.f32.mrb[0].mxu0
    %912 = vdwg.mxu0
    %vm913 = vcmp.gt.f32.partialorder %v900, 0.0
    %vm914 = vcmp.gt.f32.partialorder %v905, 0.0
    %vm915 = vcmp.gt.f32.partialorder %v910, 0.0
    %v916 = vmin.f32 %v900, 0.0
    %v917 = vmin.f32 %v905, 0.0
    %v918 = vmin.f32 %v910, 0.0
    %v919 = vmul.f32 %v916, 1.442695
    %v920 = vpow.pop %v919
    %v921 = vmul.f32 %v917, 1.442695
    %v922 = vpow.pop %v921
    %v923 = vmul.f32 %v918, 1.442695
    %v924 = vpow.pop %v923
    %v925 = vsub.f32 %v920, 1.0
    %v926 = vsub.f32 %v922, 1.0
    %v927 = vsub.f32 %v924, 1.0
    %v928 = vsel %vm913, %v900, %v925
    %v929 = vsel %vm914, %v905, %v926
    %v930 = vsel %vm915, %v910, %v927
    %v931 = vld [vmem:[%s7] sm:$0xff]
    %v932 = vld [vmem:[%s7 + $0x8] sm:$0xff]
    %v933 = vld [vmem:[%s7 + $0x10] sm:$0xff]
    %v934 = vld [vmem:[%s7 + $0x18] sm:$0x3f]
    %v935 = vld [vmem:[%s8] sm:$0x1]
    %v937 = vlaneseq
    %v938 = vshrl.u32 %v937, 7
    %v939 = vsub.s32 0, %v938
    %v940 = vrot.slane %v935, %v939
    %vm942 = vcmask 244736
    %v944 = vsel %vm942, %v928, 0
    %v947 = vsel %vm942, %v929, 0
    %v950 = vsel %vm942, %v930, 0
    %vm952 = vcmask 1045504
    %v954 = vsel %vm952, %v934, 0
    %956 = vmatprep.subr.mxu0 0.0
    %957 = vmatpush1.msra.mxu0 %v931
    %958 = vmatprep.subr.mxu0 0.0
    %959 = vmatpush1.msra.mxu0 %v932
    %960 = vmatprep.subr.mxu0 0.0
    %961 = vmatpush1.msra.mxu0 %v933
    %962 = vmatprep.subr.mxu0 0.0
    %963 = vmatpush1.msra.mxu0 %v954
    %964 = vmatprep.subr.mxu0 0.0
    %965 = vmatpush1.msra.mxu0 0.0
    %966 = vmatprep.subr.mxu0 0.0
    %967 = vmatpush1.msra.mxu0 0.0
    %968 = vmatprep.subr.mxu0 0.0
    %969 = vmatpush1.msra.mxu0 0.0
    %970 = vmatprep.subr.mxu0 0.0
    %971 = vmatpush1.msra.mxu0 0.0
    %972 = vmatprep.subr.mxu0 0.0
    %973 = vmatpush1.msra.mxu0 0.0
    %974 = vmatprep.subr.mxu0 0.0
    %975 = vmatpush1.msra.mxu0 0.0
    %976 = vmatprep.subr.mxu0 0.0
    %977 = vmatpush1.msra.mxu0 0.0
    %978 = vmatprep.subr.mxu0 0.0
    %979 = vmatpush1.msra.mxu0 0.0
    %980 = vmatprep.subr.mxu0 0.0
    %981 = vmatpush1.msra.mxu0 0.0
    %982 = vmatprep.subr.mxu0 0.0
    %983 = vmatpush1.msra.mxu0 0.0
    %984 = vmatprep.subr.mxu0 0.0
    %985 = vmatpush1.msra.mxu0 0.0
    %986 = vmatprep.subr.mxu0 0.0
    %987 = vmatpush1.msra.mxu0 0.0
    %988 = vmatprep.subr.mxu0 0.0
    %989 = vmatpush1.msra.mxu0 0.0
    %990 = vmatprep.subr.mxu0 0.0
    %991 = vmatpush1.msra.mxu0 0.0
    %992 = vmatprep.subr.mxu0 0.0
    %993 = vmatpush1.msra.mxu0 0.0
    %994 = vmatprep.subr.mxu0 0.0
    %995 = vmatpush1.msra.mxu0 0.0
    %996 = vmatprep.subr.mxu0 0.0
    %997 = vmatpush1.msra.mxu0 0.0
    %998 = vmatprep.subr.mxu0 0.0
    %999 = vmatpush1.msra.mxu0 0.0
    %1000 = vmatprep.subr.mxu0 0.0
    %1001 = vmatpush1.msra.mxu0 0.0
    %1002 = vmatprep.subr.mxu0 0.0
    %1003 = vmatpush1.msra.mxu0 0.0
    %1004 = vmatprep.subr.mxu0 0.0
    %1005 = vmatpush1.msra.mxu0 0.0
    %1006 = vmatprep.subr.mxu0 0.0
    %1007 = vmatpush1.msra.mxu0 0.0
    %1008 = vmatprep.subr.mxu0 0.0
    %1009 = vmatpush1.msra.mxu0 0.0
    %1010 = vmatprep.subr.mxu0 0.0
    %1011 = vmatpush1.msra.mxu0 0.0
    %1012 = vmatprep.subr.mxu0 0.0
    %1013 = vmatpush1.msra.mxu0 0.0
    %1014 = vmatprep.subr.mxu0 0.0
    %1015 = vmatpush1.msra.mxu0 0.0
    %1016 = vmatprep.subr.mxu0 0.0
    %1017 = vmatpush1.msra.mxu0 0.0
    %1018 = vmatprep.subr.mxu0 0.0
    %1019 = vmatpush1.msra.mxu0 0.0
    %1020 = vmatprep.mubr.f32.mxu0 0.0
    %1021 = vmatmul.mubr.f32.gmra.mrb[0].mxu0 %v944
    %v1022 = vpop.f32.mrb[0].mxu0
    %v1023 = vadd.f32 %v940, %v1022
    %v1024 = vpop.f32.mrb[0].mxu0
    %1025 = vmatprep.mubr.f32.mxu0 0.0
    %1026 = vmatmul.mubr.f32.gmra.mrb[0].mxu0 %v947
    %v1027 = vpop.f32.mrb[0].mxu0
    %v1028 = vadd.f32 %v940, %v1027
    %v1029 = vpop.f32.mrb[0].mxu0
    %1030 = vmatprep.mubr.f32.mxu0 0.0
    %1031 = vmatmul.mubr.f32.gmra.mrb[0].mxu0 %v950
    %v1032 = vpop.f32.mrb[0].mxu0
    %v1033 = vadd.f32 %v940, %v1032
    %v1034 = vpop.f32.mrb[0].mxu0
    %1035 = vdwg.mxu0
    %vm1036 = vcmp.gt.f32.partialorder %v1023, 0.0
    %vm1037 = vcmp.gt.f32.partialorder %v1028, 0.0
    %vm1038 = vcmp.gt.f32.partialorder %v1033, 0.0
    %v1039 = vmin.f32 %v1023, 0.0
    %v1040 = vmin.f32 %v1028, 0.0
    %v1041 = vmin.f32 %v1033, 0.0
    %v1042 = vmul.f32 %v1039, 1.442695
    %v1043 = vpow.pop %v1042
    %v1044 = vmul.f32 %v1040, 1.442695
    %v1045 = vpow.pop %v1044
    %v1046 = vmul.f32 %v1041, 1.442695
    %v1047 = vpow.pop %v1046
    %v1048 = vsub.f32 %v1043, 1.0
    %v1049 = vsub.f32 %v1045, 1.0
    %v1050 = vsub.f32 %v1047, 1.0
    %v1051 = vsel %vm1036, %v1023, %v1048
    %v1052 = vsel %vm1037, %v1028, %v1049
    %v1053 = vsel %vm1038, %v1033, %v1050
    %vm1054 = vcmask 162816
    %1055 = vst.msk [vmem:[#allocation2] sm:$0xff] %vm1054, %v1051
    %1056 = vst.msk [vmem:[#allocation2 + $0x8] sm:$0xff] %vm1054, %v1052
    %1057 = vst.msk [vmem:[#allocation2 + $0x10] sm:$0xff] %vm1054, %v1053
    // Predicated region
    $region38: #{tpu_custom_call.1} parent=1 // pred_check
      _
    $region39: #{tpu_custom_call.1} parent=1 // pred_check_branch
      %1059 = sbr.rel (0) target = $region41
    $region40: #{tpu_custom_call.1} parent=1 // pred_region
      %s1061 = ssub.s32 384, 384
      %1062 = vsyncadd [#allocation3], %s1061
      %s1063 = sshll.u32 [#allocation2], 4
      %s1064 = int_to_ptr.vmem [resolvable:$true] %s1063
      %1069 = dma.vmem_to_hbm [thread:$0]  %s1064, 384, %s9, [#allocation3], 128, 128, 8
    $region41: #{tpu_custom_call.1} parent=1 // pred_fallthru
      _
    // Predicated region
    $region42: #{tpu_custom_call.1} parent=1 // pred_check
      _
    $region43: #{tpu_custom_call.1} parent=1 // pred_check_branch
      %1071 = sbr.rel (0) target = $region45
    $region44: #{tpu_custom_call.1} parent=1 // pred_region
      %1072 = dma.done [#allocation3], 384
    $region45: #{tpu_custom_call.1} parent=1 // pred_fallthru
      _
    %1073 = vsyncpa [#allocation3], 1

</llo_original>
